<compile_context>
chip_gen: v5e
topology: v5e:2x2
jax: 0.10.0
libtpu: 0.0.40
codegen_flags: <defaults>
</compile_context>

<pallas_src>
import jax
import jax.numpy as jnp
from jax.experimental import pallas as pl
from jax.experimental.pallas import tpu as pltpu

EPS = 1e-5
N_IN, H1, H2, H3, N_OUT = 42, 256, 128, 64, 26


def fcnn_kernel(x_ref, w_ref, b_ref, o_ref, xs_ref):
    # x_ref : [TB, 42]  f32   (unpadded activations, pipelined over batch)
    # w_ref : [384, 256] bf16 (packed, BN pre-folded, VMEM-resident)
    #          rows   0:128 -> w1 (in 42->128 zero-padded, out 256)
    #          rows 128:256 -> w2 split: cols 0:128 = w2[:128,:], cols 128:256 = w2[128:,:]
    #          rows 256:384 -> cols 0:128 = w3 (out 64->128), cols 128:256 = w4 (26->128)
    # b_ref : [1, 640]  f32   (b1 | b2 | b3 pad | b4 pad at lane offsets 0/256/384/512)
    # o_ref : [TB, 128] bf16
    # xs_ref: [TB, 128] bf16  VMEM scratch for lane-padding x.
    nin = x_ref.shape[1]

    # Lane-pad 42 -> 128 inside VMEM (zeroed every step: under "parallel" each
    # TensorCore owns its own scratch instance).
    xs_ref[...] = jnp.zeros_like(xs_ref)
    xs_ref[:, 0:nin] = x_ref[...].astype(jnp.bfloat16)
    x = xs_ref[...]                                                    # [TB,128] bf16

    # fc1 + bn1 + relu  (dropout = identity in eval mode)
    h = jnp.dot(x, w_ref[0:128, :], preferred_element_type=jnp.float32)
    h = jnp.maximum(h + b_ref[:, 0:256], 0.0).astype(jnp.bfloat16)     # [TB,256]

    # fc2 + bn2 + relu  (w2 stored as two side-by-side 128x128 blocks)
    h2 = jnp.dot(h[:, 0:128], w_ref[128:256, 0:128],
                 preferred_element_type=jnp.float32)
    h2 = h2 + jnp.dot(h[:, 128:256], w_ref[128:256, 128:256],
                      preferred_element_type=jnp.float32)
    h2 = jnp.maximum(h2 + b_ref[:, 256:384], 0.0).astype(jnp.bfloat16)  # [TB,128]

    # fc3 + bn3 + relu  (zero-padded output cols stay exactly zero through ReLU)
    h3 = jnp.dot(h2, w_ref[256:384, 0:128], preferred_element_type=jnp.float32)
    h3 = jnp.maximum(h3 + b_ref[:, 384:512], 0.0).astype(jnp.bfloat16)  # [TB,128]

    # fc4 (no activation); lane-dense bf16 store, real 26 cols sliced outside.
    h4 = jnp.dot(h3, w_ref[256:384, 128:256], preferred_element_type=jnp.float32)
    o_ref[...] = (h4 + b_ref[:, 512:640]).astype(o_ref.dtype)


def _round_up(n, m):
    return ((n + m - 1) // m) * m


def _fold_bn(w, b, gamma, beta, mean, var):
    """Fold eval-mode BatchNorm1d into the preceding Linear (w is PyTorch [out, in])."""
    scale = gamma * jax.lax.rsqrt(var + EPS)      # [out]
    wt = (w * scale[:, None]).T                   # [in, out]
    bp = (b - mean) * scale + beta                # [out]
    return wt, bp


def prepare_params(params):
    """One-time parameter prep (hoisted out of the per-call path):
    fold BN, transpose to [in,out], zero-pad to 128-aligned tiles, pack all four
    weight matrices into a single [384,256] bf16 buffer and all biases into one
    [1,640] f32 row."""
    w1, b1 = _fold_bn(params["w1"], params["b1"], params["gamma1"],
                      params["beta1"], params["mean1"], params["var1"])
    w2, b2 = _fold_bn(params["w2"], params["b2"], params["gamma2"],
                      params["beta2"], params["mean2"], params["var2"])
    w3, b3 = _fold_bn(params["w3"], params["b3"], params["gamma3"],
                      params["beta3"], params["mean3"], params["var3"])
    w4, b4 = params["w4"].T, params["b4"]

    w1p = jnp.pad(w1, ((0, 128 - N_IN), (0, 0)))          # [128, 256]
    w3p = jnp.pad(w3, ((0, 0), (0, 128 - H3)))             # [128, 128]
    w4p = jnp.pad(w4, ((0, 128 - H3), (0, 128 - N_OUT)))   # [128, 128]
    b3p = jnp.pad(b3, (0, 128 - H3))
    b4p = jnp.pad(b4, (0, 128 - N_OUT))

    w_packed = jnp.concatenate([
        w1p,                                                # rows   0:128
        jnp.concatenate([w2[:128], w2[128:]], axis=1),      # rows 128:256
        jnp.concatenate([w3p, w4p], axis=1),                # rows 256:384
    ], axis=0).astype(jnp.bfloat16)                         # [384, 256] bf16 (~192 KiB)

    b_packed = jnp.concatenate([b1, b2, b3p, b4p]).reshape(1, 640).astype(jnp.float32)
    return w_packed, b_packed


def _choose_tiling(batch, tb_max):
    """Pick (TB, padded batch). Small B: one step (latency path). Large B: >=2
    steps (v7x megacore) with tile chosen so row padding stays negligible."""
    bp8 = _round_up(batch, 8)
    if bp8 <= min(tb_max, 512):
        return bp8, bp8
    n_steps = max(2, pl.cdiv(bp8, tb_max))
    tb = _round_up(pl.cdiv(bp8, n_steps), 8)
    return tb, n_steps * tb


def _fcnn_forward_impl(x, w_packed, b_packed, tb_max):
    batch, nin = x.shape
    assert nin == N_IN, nin
    tb, bp = _choose_tiling(batch, tb_max)
    if bp != batch:
        x = jnp.pad(x, ((0, bp - batch), (0, 0)))   # small row-only pad

    out = pl.pallas_call(
        fcnn_kernel,
        out_shape=jax.ShapeDtypeStruct((bp, 128), jnp.bfloat16),
        grid=(bp // tb,),
        in_specs=[
            pl.BlockSpec((tb, nin), lambda i: (i, 0)),     # x tile (pipelined, unpadded)
            pl.BlockSpec((384, 256), lambda i: (0, 0)),    # packed weights (VMEM-resident)
            pl.BlockSpec((1, 640), lambda i: (0, 0)),      # packed biases
        ],
        out_specs=pl.BlockSpec((tb, 128), lambda i: (i, 0)),
        scratch_shapes=[pltpu.VMEM((tb, 128), jnp.bfloat16)],
        compiler_params=pltpu.CompilerParams(dimension_semantics=("parallel",)),
    )(x, w_packed, b_packed)

    return out[:batch, :N_OUT].astype(jnp.float32)


fcnn_forward = jax.jit(_fcnn_forward_impl, static_argnames=("tb_max",))


def init_params(key):
    """Deterministic synthetic parameters matching FCNN.__init__ shapes."""
    dims = [(N_IN, H1), (H1, H2), (H2, H3), (H3, N_OUT)]
    keys = iter(jax.random.split(key, 20))
    params = {}
    for i, (fin, fout) in enumerate(dims, start=1):
        bound = 1.0 / jnp.sqrt(fin)
        params[f"w{i}"] = jax.random.uniform(
            next(keys), (fout, fin), jnp.float32, -bound, bound)   # PyTorch (out, in)
        params[f"b{i}"] = jax.random.uniform(
            next(keys), (fout,), jnp.float32, -bound, bound)
        if i < 4:  # BatchNorm1d(fout)
            params[f"gamma{i}"] = 1.0 + 0.1 * jax.random.normal(next(keys), (fout,), jnp.float32)
            params[f"beta{i}"] = 0.1 * jax.random.normal(next(keys), (fout,), jnp.float32)
            params[f"mean{i}"] = 0.1 * jax.random.normal(next(keys), (fout,), jnp.float32)
            params[f"var{i}"] = 1.0 + 0.1 * jax.random.uniform(next(keys), (fout,), jnp.float32)
    return params


def fcnn_reference(x, params):
    """Plain-JAX (f32) reference of the eval-mode PyTorch forward."""
    h = x
    for i in (1, 2, 3):
        h = h @ params[f"w{i}"].T + params[f"b{i}"]
        h = (h - params[f"mean{i}"]) * jax.lax.rsqrt(params[f"var{i}"] + EPS)
        h = h * params[f"gamma{i}"] + params[f"beta{i}"]
        h = jnp.maximum(h, 0.0)
    return h @ params["w4"].T + params["b4"]


if __name__ == "__main__":
    key = jax.random.PRNGKey(0)
    pkey, xkey = jax.random.split(key)
    params = init_params(pkey)
    w_packed, b_packed = prepare_params(params)           # hoisted, one-time prep
    x = jax.random.normal(xkey, (8, N_IN), jnp.float32)   # batch=8, features=42

    out = jax.block_until_ready(fcnn_forward(x, w_packed, b_packed, tb_max=1024))
    ref = jax.block_until_ready(fcnn_reference(x, params))

    assert out.shape == (8, N_OUT), out.shape
    err = float(jnp.max(jnp.abs(out - ref)))
    # bf16 weights/activations/output (f32 MXU accumulate) => relaxed tolerance.
    assert jnp.allclose(out, ref, atol=3e-2, rtol=3e-2), err
    print("KERNEL_OK")
</pallas_src>

<mosaic_0001>
module attributes {stable_mosaic.version = 11 : i64} {
  func.func @fcnn_kernel(%arg0: i32, %arg1: memref<8x42xf32, #tpu.memory_space<vmem>>, %arg2: memref<384x256xbf16, #tpu.memory_space<vmem>>, %arg3: memref<1x640xf32, #tpu.memory_space<vmem>>, %arg4: memref<8x128xbf16, #tpu.memory_space<vmem>>, %arg5: memref<8x128xbf16, #tpu.memory_space<vmem>>) attributes {dimension_semantics = [#tpu.dimension_semantics<parallel>], iteration_bounds = array<i64: 1>, scalar_prefetch = 0 : i64, scratch_operands = 1 : i64, tpu.core_type = #tpu.core_type<tc>, window_params = [{transform_indices = @transform_0, window_bounds = array<i64: 8, 42>}, {pipeline_mode = #tpu.pipeline_mode<synchronous>, transform_indices = @transform_1, window_bounds = array<i64: 384, 256>}, {pipeline_mode = #tpu.pipeline_mode<synchronous>, transform_indices = @transform_2, window_bounds = array<i64: 1, 640>}, {transform_indices = @transform_3, window_bounds = array<i64: 8, 128>}]} {
    %cst = arith.constant 0.000000e+00 : bf16
    %0 = vector.broadcast %cst : bf16 to vector<8x128xbf16>
    %c0 = arith.constant 0 : index
    %c0_0 = arith.constant 0 : index
    %1 = vector.load %arg5[%c0, %c0_0] : memref<8x128xbf16, #tpu.memory_space<vmem>>, vector<8x128xbf16>
    tpu.vector_store %arg5[%c0, %c0_0], %0 {strides = array<i32>} : memref<8x128xbf16, #tpu.memory_space<vmem>>, vector<8x128xbf16>,
    %c0_1 = arith.constant 0 : index
    %c0_2 = arith.constant 0 : index
    %2 = vector.load %arg1[%c0_1, %c0_2] : memref<8x42xf32, #tpu.memory_space<vmem>>, vector<8x42xf32>
    %3 = arith.truncf %2 : vector<8x42xf32> to vector<8x42xbf16>
    %c0_3 = arith.constant 0 : index
    %c0_4 = arith.constant 0 : index
    %4 = vector.load %arg5[%c0_3, %c0_4] : memref<8x128xbf16, #tpu.memory_space<vmem>>, vector<8x42xbf16>
    tpu.vector_store %arg5[%c0_3, %c0_4], %3 {strides = array<i32>} : memref<8x128xbf16, #tpu.memory_space<vmem>>, vector<8x42xbf16>,
    %c0_5 = arith.constant 0 : index
    %c0_6 = arith.constant 0 : index
    %5 = vector.load %arg5[%c0_5, %c0_6] : memref<8x128xbf16, #tpu.memory_space<vmem>>, vector<8x128xbf16>
    %c0_7 = arith.constant 0 : index
    %c0_8 = arith.constant 0 : index
    %6 = vector.load %arg2[%c0_7, %c0_8] : memref<384x256xbf16, #tpu.memory_space<vmem>>, vector<128x256xbf16>
    %cst_9 = arith.constant dense<0.000000e+00> : vector<8x256xf32>
    %7 = tpu.matmul %5, %6, %cst_9 {dimension_numbers = #tpu.dot_dimension_numbers<[1], [0], [0], [1], [0, 0, 1, 1], [], []>} : vector<8x128xbf16>, vector<128x256xbf16>, vector<8x256xf32> -> vector<8x256xf32>
    %c0_10 = arith.constant 0 : index
    %c0_11 = arith.constant 0 : index
    %8 = vector.load %arg3[%c0_10, %c0_11] : memref<1x640xf32, #tpu.memory_space<vmem>>, vector<1x256xf32>
    %9 = vector.broadcast %8 : vector<1x256xf32> to vector<8x256xf32>
    %10 = arith.addf %7, %9 : vector<8x256xf32>
    %cst_12 = arith.constant 0.000000e+00 : f32
    %11 = vector.broadcast %cst_12 : f32 to vector<8x256xf32>
    %12 = arith.maximumf %10, %11 : vector<8x256xf32>
    %13 = arith.truncf %12 : vector<8x256xf32> to vector<8x256xbf16>
    %14 = vector.extract_strided_slice %13 {offsets = [0, 0], sizes = [8, 128], strides = [1, 1]} : vector<8x256xbf16> to vector<8x128xbf16>
    %c128 = arith.constant 128 : index
    %c0_13 = arith.constant 0 : index
    %15 = vector.load %arg2[%c128, %c0_13] : memref<384x256xbf16, #tpu.memory_space<vmem>>, vector<128x128xbf16>
    %cst_14 = arith.constant dense<0.000000e+00> : vector<8x128xf32>
    %16 = tpu.matmul %14, %15, %cst_14 {dimension_numbers = #tpu.dot_dimension_numbers<[1], [0], [0], [1], [0, 0, 1, 1], [], []>} : vector<8x128xbf16>, vector<128x128xbf16>, vector<8x128xf32> -> vector<8x128xf32>
    %17 = vector.extract_strided_slice %13 {offsets = [0, 128], sizes = [8, 128], strides = [1, 1]} : vector<8x256xbf16> to vector<8x128xbf16>
    %c128_15 = arith.constant 128 : index
    %c128_16 = arith.constant 128 : index
    %18 = vector.load %arg2[%c128_15, %c128_16] : memref<384x256xbf16, #tpu.memory_space<vmem>>, vector<128x128xbf16>
    %cst_17 = arith.constant dense<0.000000e+00> : vector<8x128xf32>
    %19 = tpu.matmul %17, %18, %cst_17 {dimension_numbers = #tpu.dot_dimension_numbers<[1], [0], [0], [1], [0, 0, 1, 1], [], []>} : vector<8x128xbf16>, vector<128x128xbf16>, vector<8x128xf32> -> vector<8x128xf32>
    %20 = arith.addf %16, %19 : vector<8x128xf32>
    %c0_18 = arith.constant 0 : index
    %c256 = arith.constant 256 : index
    %21 = vector.load %arg3[%c0_18, %c256] : memref<1x640xf32, #tpu.memory_space<vmem>>, vector<1x128xf32>
    %22 = vector.broadcast %21 : vector<1x128xf32> to vector<8x128xf32>
    %23 = arith.addf %20, %22 : vector<8x128xf32>
    %cst_19 = arith.constant 0.000000e+00 : f32
    %24 = vector.broadcast %cst_19 : f32 to vector<8x128xf32>
    %25 = arith.maximumf %23, %24 : vector<8x128xf32>
    %26 = arith.truncf %25 : vector<8x128xf32> to vector<8x128xbf16>
    %c256_20 = arith.constant 256 : index
    %c0_21 = arith.constant 0 : index
    %27 = vector.load %arg2[%c256_20, %c0_21] : memref<384x256xbf16, #tpu.memory_space<vmem>>, vector<128x128xbf16>
    %cst_22 = arith.constant dense<0.000000e+00> : vector<8x128xf32>
    %28 = tpu.matmul %26, %27, %cst_22 {dimension_numbers = #tpu.dot_dimension_numbers<[1], [0], [0], [1], [0, 0, 1, 1], [], []>} : vector<8x128xbf16>, vector<128x128xbf16>, vector<8x128xf32> -> vector<8x128xf32>
    %c0_23 = arith.constant 0 : index
    %c384 = arith.constant 384 : index
    %29 = vector.load %arg3[%c0_23, %c384] : memref<1x640xf32, #tpu.memory_space<vmem>>, vector<1x128xf32>
    %30 = vector.broadcast %29 : vector<1x128xf32> to vector<8x128xf32>
    %31 = arith.addf %28, %30 : vector<8x128xf32>
    %cst_24 = arith.constant 0.000000e+00 : f32
    %32 = vector.broadcast %cst_24 : f32 to vector<8x128xf32>
    %33 = arith.maximumf %31, %32 : vector<8x128xf32>
    %34 = arith.truncf %33 : vector<8x128xf32> to vector<8x128xbf16>
    %c256_25 = arith.constant 256 : index
    %c128_26 = arith.constant 128 : index
    %35 = vector.load %arg2[%c256_25, %c128_26] : memref<384x256xbf16, #tpu.memory_space<vmem>>, vector<128x128xbf16>
    %cst_27 = arith.constant dense<0.000000e+00> : vector<8x128xf32>
    %36 = tpu.matmul %34, %35, %cst_27 {dimension_numbers = #tpu.dot_dimension_numbers<[1], [0], [0], [1], [0, 0, 1, 1], [], []>} : vector<8x128xbf16>, vector<128x128xbf16>, vector<8x128xf32> -> vector<8x128xf32>
    %c0_28 = arith.constant 0 : index
    %c512 = arith.constant 512 : index
    %37 = vector.load %arg3[%c0_28, %c512] : memref<1x640xf32, #tpu.memory_space<vmem>>, vector<1x128xf32>
    %38 = vector.broadcast %37 : vector<1x128xf32> to vector<8x128xf32>
    %39 = arith.addf %36, %38 : vector<8x128xf32>
    %40 = arith.truncf %39 : vector<8x128xf32> to vector<8x128xbf16>
    %c0_29 = arith.constant 0 : index
    %c0_30 = arith.constant 0 : index
    %41 = vector.load %arg4[%c0_29, %c0_30] : memref<8x128xbf16, #tpu.memory_space<vmem>>, vector<8x128xbf16>
    tpu.vector_store %arg4[%c0_29, %c0_30], %40 {strides = array<i32>} : memref<8x128xbf16, #tpu.memory_space<vmem>>, vector<8x128xbf16>,
    return
  }
  func.func @transform_0(%arg0: i32) -> (i32, i32) {
    %c0_i32 = arith.constant 0 : i32
    %c0_i32_0 = arith.constant 0 : i32
    return %arg0, %c0_i32 : i32, i32
  }
  func.func @transform_1(%arg0: i32) -> (i32, i32) {
    %c0_i32 = arith.constant 0 : i32
    %c0_i32_0 = arith.constant 0 : i32
    %c0_i32_1 = arith.constant 0 : i32
    return %c0_i32, %c0_i32_0 : i32, i32
  }
  func.func @transform_2(%arg0: i32) -> (i32, i32) {
    %c0_i32 = arith.constant 0 : i32
    %c0_i32_0 = arith.constant 0 : i32
    %c0_i32_1 = arith.constant 0 : i32
    return %c0_i32, %c0_i32_0 : i32, i32
  }
  func.func @transform_3(%arg0: i32) -> (i32, i32) {
    %c0_i32 = arith.constant 0 : i32
    %c0_i32_0 = arith.constant 0 : i32
    return %arg0, %c0_i32 : i32, i32
  }
}

</mosaic_0001>

<llo_original>
// kernel: _fcnn_forward_impl.1
$region0: #{_fcnn_forward_impl.1}
  #allocation0 [shape = 'u32[]', space=smem, size = 0x4, offset = 0x4, fixed_abs, tag = 'smem constant byte address 0x4 - core index']
  #allocation1 [shape = 'u32[72,128]{1,0:T(1,128)}', space=vmem, size = 0x9000, scoped, tag = 'internal scratch']
  #allocation2 [shape = 'bf16[8,128]{1,0:T(8,128)(2,1)}', space=vmem, size = 0x800, scoped, tag = 'scratch operand']
  %s0 = inlined_call_operand.hbm [shape: f32[8,42], index: 0, kind: input, shape index: {}]
  %s1 = inlined_call_operand.hbm [shape: bf16[384,256], index: 1, kind: input, shape index: {}]
  %s2 = inlined_call_operand.hbm [shape: f32[1,640], index: 2, kind: input, shape index: {}]
  %s3 = inlined_call_operand.vmem [shape: bf16[8,128], index: 3, kind: output, shape index: {}]
  %s4 = sld [smem:[#allocation0]]
  $region34: #{_fcnn_forward_impl.1} parent=0
    _
  %s6 = ssub.s32 1, %s4
  %s7 = scalar_select 0, %s6, %s4
  $region1: #{_fcnn_forward_impl.1} parent=0
    #allocation3 [shape = 'u8[4096]{0}', space=vmem, size = 0x1000, scoped, tag = 'input window, operand 0, single buffered']
    #allocation4 [shape = 's32[1]{0}', space=sflag, size = 0x4, scoped, tag = 'scoped memory for _fcnn_forward_impl.1']
    #allocation5 [shape = 'u8[196608]{0}', space=vmem, size = 0x30000, scoped, tag = 'input window, operand 1, single buffered']
    #allocation6 [shape = 's32[1]{0}', space=sflag, size = 0x4, scoped, tag = 'scoped memory for _fcnn_forward_impl.1']
    #allocation7 [shape = 'u8[2560]{0}', space=vmem, size = 0xc00, scoped, tag = 'input window, operand 2, single buffered']
    %8 = vsyncpa [#allocation4], 0
    %9 = vsyncpa [#allocation6], 0
    // Predicated region
    $region2: #{_fcnn_forward_impl.1} parent=1 // pred_check
      _
    $region3: #{_fcnn_forward_impl.1} parent=1 // pred_check_branch
      %11 = sbr.rel (0) target = $region5
    $region4: #{_fcnn_forward_impl.1} parent=1 // pred_region
      %13 = vsyncadd [#allocation4], 0
      %s15 = sshll.u32 %s0, 4
      %s16 = int_to_ptr.hbm [resolvable:$true] %s15
      %s17 = sshll.u32 [#allocation3], 4
      %s18 = int_to_ptr.vmem [resolvable:$true] %s17
      %20 = dma.hbm_to_vmem [thread:$0]  %s16, 128, %s18, [#allocation4]
    $region5: #{_fcnn_forward_impl.1} parent=1 // pred_fallthru
      _
    // Predicated region
    $region6: #{_fcnn_forward_impl.1} parent=1 // pred_check
      _
    $region7: #{_fcnn_forward_impl.1} parent=1 // pred_check_branch
      %22 = sbr.rel (0) target = $region9
    $region8: #{_fcnn_forward_impl.1} parent=1 // pred_region
      %24 = vsyncadd [#allocation6], 0
      %s25 = sshll.u32 %s1, 4
      %s26 = int_to_ptr.hbm [resolvable:$true] %s25
      %s27 = sshll.u32 [#allocation5], 4
      %s28 = int_to_ptr.vmem [resolvable:$true] %s27
      %33 = dma.hbm_to_vmem [thread:$0]  %s26, 6144, %s28, [#allocation6], 128, 128, 8
    $region9: #{_fcnn_forward_impl.1} parent=1 // pred_fallthru
      _
    // Predicated region
    $region10: #{_fcnn_forward_impl.1} parent=1 // pred_check
      _
    $region11: #{_fcnn_forward_impl.1} parent=1 // pred_check_branch
      %35 = sbr.rel (0) target = $region13
    $region12: #{_fcnn_forward_impl.1} parent=1 // pred_region
      %37 = vsyncadd [#allocation6], 0
      %s39 = sshll.u32 %s2, 4
      %s40 = int_to_ptr.hbm [resolvable:$true] %s39
      %s41 = sshll.u32 [#allocation7], 4
      %s42 = int_to_ptr.vmem [resolvable:$true] %s41
      %44 = dma.hbm_to_vmem [thread:$0]  %s40, 80, %s42, [#allocation6]
    $region13: #{_fcnn_forward_impl.1} parent=1 // pred_fallthru
      _
    // Predicated region
    $region14: #{_fcnn_forward_impl.1} parent=1 // pred_check
      _
    $region15: #{_fcnn_forward_impl.1} parent=1 // pred_check_branch
      %46 = sbr.rel (0) target = $region17
    $region16: #{_fcnn_forward_impl.1} parent=1 // pred_region
      %48 = dma.done [#allocation4], 128
    $region17: #{_fcnn_forward_impl.1} parent=1 // pred_fallthru
      _
    // Predicated region
    $region18: #{_fcnn_forward_impl.1} parent=1 // pred_check
      _
    $region19: #{_fcnn_forward_impl.1} parent=1 // pred_check_branch
      %50 = sbr.rel (0) target = $region21
    $region20: #{_fcnn_forward_impl.1} parent=1 // pred_region
      %52 = dma.done [#allocation6], 6144
    $region21: #{_fcnn_forward_impl.1} parent=1 // pred_fallthru
      _
    // Predicated region
    $region22: #{_fcnn_forward_impl.1} parent=1 // pred_check
      _
    $region23: #{_fcnn_forward_impl.1} parent=1 // pred_check_branch
      %54 = sbr.rel (0) target = $region25
    $region24: #{_fcnn_forward_impl.1} parent=1 // pred_region
      %56 = dma.done [#allocation6], 80
    $region25: #{_fcnn_forward_impl.1} parent=1 // pred_fallthru
      _
    %58 = vst [vmem:[#allocation2] sm:$0xf] 0
    %v59 = vld [vmem:[#allocation3] sm:$0xff]
    %v60 = vpack.c.bf16 %v59, %v59
    %vm61 = vcmask 338944
    %62 = vst.msk [vmem:[#allocation2] sm:$0xf] %vm61, %v60
    %v63 = vld [vmem:[#allocation2] sm:$0xf]
    %v64 = vld [vmem:[#allocation5] sm:$0xff]
    %v65 = vld [vmem:[#allocation5 + $0x8] sm:$0xff]
    %v66 = vld [vmem:[#allocation5 + $0x10] sm:$0xff]
    %v67 = vld [vmem:[#allocation5 + $0x18] sm:$0xff]
    %v68 = vld [vmem:[#allocation5 + $0x20] sm:$0xff]
    %v69 = vld [vmem:[#allocation5 + $0x28] sm:$0xff]
    %v70 = vld [vmem:[#allocation5 + $0x30] sm:$0xff]
    %v71 = vld [vmem:[#allocation5 + $0x38] sm:$0xff]
    %v72 = vld [vmem:[#allocation5 + $0x40] sm:$0xff]
    %v73 = vld [vmem:[#allocation5 + $0x48] sm:$0xff]
    %v74 = vld [vmem:[#allocation5 + $0x50] sm:$0xff]
    %v75 = vld [vmem:[#allocation5 + $0x58] sm:$0xff]
    %v76 = vld [vmem:[#allocation5 + $0x60] sm:$0xff]
    %v77 = vld [vmem:[#allocation5 + $0x68] sm:$0xff]
    %v78 = vld [vmem:[#allocation5 + $0x70] sm:$0xff]
    %v79 = vld [vmem:[#allocation5 + $0x78] sm:$0xff]
    %v80 = vld [vmem:[#allocation7] sm:$0x3]
    %v82 = vperm.slane %v80, 0
    %v83 = vperm.slane %v80, 1
    %v102 = vunpack.c.l.b16 %v64
    %v103 = vunpack.c.h.b16 %v64
    %v104 = vunpack.c.l.b16 %v65
    %v105 = vunpack.c.h.b16 %v65
    %v106 = vunpack.c.l.b16 %v66
    %v107 = vunpack.c.h.b16 %v66
    %v108 = vunpack.c.l.b16 %v67
    %v109 = vunpack.c.h.b16 %v67
    %v110 = vunpack.c.l.b16 %v68
    %v111 = vunpack.c.h.b16 %v68
    %v112 = vunpack.c.l.b16 %v69
    %v113 = vunpack.c.h.b16 %v69
    %v114 = vunpack.c.l.b16 %v70
    %v115 = vunpack.c.h.b16 %v70
    %v116 = vunpack.c.l.b16 %v71
    %v117 = vunpack.c.h.b16 %v71
    %v118 = vunpack.c.l.b16 %v72
    %v119 = vunpack.c.h.b16 %v72
    %v120 = vunpack.c.l.b16 %v73
    %v121 = vunpack.c.h.b16 %v73
    %v122 = vunpack.c.l.b16 %v74
    %v123 = vunpack.c.h.b16 %v74
    %v124 = vunpack.c.l.b16 %v75
    %v125 = vunpack.c.h.b16 %v75
    %v126 = vunpack.c.l.b16 %v76
    %v127 = vunpack.c.h.b16 %v76
    %v128 = vunpack.c.l.b16 %v77
    %v129 = vunpack.c.h.b16 %v77
    %v130 = vunpack.c.l.b16 %v78
    %v131 = vunpack.c.h.b16 %v78
    %v132 = vunpack.c.l.b16 %v79
    %v133 = vunpack.c.h.b16 %v79
    %v134 = vpack.c.b16 %v104, %v102
    %v135 = vpack.c.b16 %v105, %v103
    %v136 = vpack.c.b16 %v108, %v106
    %v137 = vpack.c.b16 %v109, %v107
    %v138 = vpack.c.b16 %v112, %v110
    %v139 = vpack.c.b16 %v113, %v111
    %v140 = vpack.c.b16 %v116, %v114
    %v141 = vpack.c.b16 %v117, %v115
    %v142 = vpack.c.b16 %v120, %v118
    %v143 = vpack.c.b16 %v121, %v119
    %v144 = vpack.c.b16 %v124, %v122
    %v145 = vpack.c.b16 %v125, %v123
    %v146 = vpack.c.b16 %v128, %v126
    %v147 = vpack.c.b16 %v129, %v127
    %v148 = vpack.c.b16 %v132, %v130
    %v149 = vpack.c.b16 %v133, %v131
    %166 = vmatpush.bf16.msra.mxu0 %v148
    %167 = vmatpush.bf16.msra.mxu0 %v146
    %168 = vmatpush.bf16.msra.mxu0 %v144
    %169 = vmatpush.bf16.msra.mxu0 %v142
    %170 = vmatpush.bf16.msra.mxu0 %v140
    %171 = vmatpush.bf16.msra.mxu0 %v138
    %172 = vmatpush.bf16.msra.mxu0 %v136
    %173 = vmatpush.bf16.msra.mxu0 %v134
    %174 = vmatmul.bf16.gmra.mxu0 %v63
    %v175 = vpop.f32.mrf.mxu0
    %v176 = vadd.f32 %v82, %v175
    %v177 = vpop.f32.mrf.mxu0
    %178 = vdwg.mxu0
    %179 = vmatpush.bf16.msra.mxu0 %v149
    %180 = vmatpush.bf16.msra.mxu0 %v147
    %181 = vmatpush.bf16.msra.mxu0 %v145
    %182 = vmatpush.bf16.msra.mxu0 %v143
    %183 = vmatpush.bf16.msra.mxu0 %v141
    %184 = vmatpush.bf16.msra.mxu0 %v139
    %185 = vmatpush.bf16.msra.mxu0 %v137
    %186 = vmatpush.bf16.msra.mxu0 %v135
    %187 = vmatmul.bf16.gmra.mxu0 %v63
    %v188 = vpop.f32.mrf.mxu0
    %v189 = vadd.f32 %v83, %v188
    %v190 = vpop.f32.mrf.mxu0
    %191 = vdwg.mxu0
    %v192 = vmax.f32 %v176, 0.0
    %v193 = vmax.f32 %v189, 0.0
    %v194 = vpack.c.bf16 %v193, %v192
    %v195 = vld [vmem:[#allocation5 + $0x80] sm:$0xf]
    %v196 = vld [vmem:[#allocation5 + $0x88] sm:$0xf]
    %v197 = vld [vmem:[#allocation5 + $0x90] sm:$0xf]
    %v198 = vld [vmem:[#allocation5 + $0x98] sm:$0xf]
    %v199 = vld [vmem:[#allocation5 + $0xa0] sm:$0xf]
    %v200 = vld [vmem:[#allocation5 + $0xa8] sm:$0xf]
    %v201 = vld [vmem:[#allocation5 + $0xb0] sm:$0xf]
    %v202 = vld [vmem:[#allocation5 + $0xb8] sm:$0xf]
    %v203 = vld [vmem:[#allocation5 + $0xc0] sm:$0xf]
    %v204 = vld [vmem:[#allocation5 + $0xc8] sm:$0xf]
    %v205 = vld [vmem:[#allocation5 + $0xd0] sm:$0xf]
    %v206 = vld [vmem:[#allocation5 + $0xd8] sm:$0xf]
    %v207 = vld [vmem:[#allocation5 + $0xe0] sm:$0xf]
    %v208 = vld [vmem:[#allocation5 + $0xe8] sm:$0xf]
    %v209 = vld [vmem:[#allocation5 + $0xf0] sm:$0xf]
    %v210 = vld [vmem:[#allocation5 + $0xf8] sm:$0xf]
    %v211 = vld [vmem:[#allocation5 + $0x84] sm:$0xf]
    %v212 = vld [vmem:[#allocation5 + $0x8c] sm:$0xf]
    %v213 = vld [vmem:[#allocation5 + $0x94] sm:$0xf]
    %v214 = vld [vmem:[#allocation5 + $0x9c] sm:$0xf]
    %v215 = vld [vmem:[#allocation5 + $0xa4] sm:$0xf]
    %v216 = vld [vmem:[#allocation5 + $0xac] sm:$0xf]
    %v217 = vld [vmem:[#allocation5 + $0xb4] sm:$0xf]
    %v218 = vld [vmem:[#allocation5 + $0xbc] sm:$0xf]
    %v219 = vld [vmem:[#allocation5 + $0xc4] sm:$0xf]
    %v220 = vld [vmem:[#allocation5 + $0xcc] sm:$0xf]
    %v221 = vld [vmem:[#allocation5 + $0xd4] sm:$0xf]
    %v222 = vld [vmem:[#allocation5 + $0xdc] sm:$0xf]
    %v223 = vld [vmem:[#allocation5 + $0xe4] sm:$0xf]
    %v224 = vld [vmem:[#allocation5 + $0xec] sm:$0xf]
    %v225 = vld [vmem:[#allocation5 + $0xf4] sm:$0xf]
    %v226 = vld [vmem:[#allocation5 + $0xfc] sm:$0xf]
    %v228 = vunpack.c.h.b16 %v194
    %v229 = vpack.c.b16 %v228, %v228
    %v247 = vunpack.c.l.b16 %v211
    %v248 = vunpack.c.l.b16 %v212
    %v249 = vunpack.c.l.b16 %v213
    %v250 = vunpack.c.l.b16 %v214
    %v251 = vunpack.c.l.b16 %v215
    %v252 = vunpack.c.l.b16 %v216
    %v253 = vunpack.c.l.b16 %v217
    %v254 = vunpack.c.l.b16 %v218
    %v255 = vunpack.c.l.b16 %v219
    %v256 = vunpack.c.l.b16 %v220
    %v257 = vunpack.c.l.b16 %v221
    %v258 = vunpack.c.l.b16 %v222
    %v259 = vunpack.c.l.b16 %v223
    %v260 = vunpack.c.l.b16 %v224
    %v261 = vunpack.c.l.b16 %v225
    %v262 = vunpack.c.l.b16 %v226
    %v263 = vpack.c.b16 %v248, %v247
    %v264 = vpack.c.b16 %v250, %v249
    %v265 = vpack.c.b16 %v252, %v251
    %v266 = vpack.c.b16 %v254, %v253
    %v267 = vpack.c.b16 %v256, %v255
    %v268 = vpack.c.b16 %v258, %v257
    %v269 = vpack.c.b16 %v260, %v259
    %v270 = vpack.c.b16 %v262, %v261
    %279 = vmatpush.bf16.msra.mxu0 %v270
    %280 = vmatpush.bf16.msra.mxu0 %v269
    %281 = vmatpush.bf16.msra.mxu0 %v268
    %282 = vmatpush.bf16.msra.mxu0 %v267
    %283 = vmatpush.bf16.msra.mxu0 %v266
    %284 = vmatpush.bf16.msra.mxu0 %v265
    %285 = vmatpush.bf16.msra.mxu0 %v264
    %286 = vmatpush.bf16.msra.mxu0 %v263
    %287 = vmatmul.bf16.gmra.mxu0 %v229
    %v288 = vpop.f32.mrf.mxu0
    %v289 = vadd.f32 0.0, %v288
    %v290 = vpop.f32.mrf.mxu0
    %291 = vdwg.mxu0
    %v308 = vunpack.c.l.b16 %v195
    %v309 = vunpack.c.l.b16 %v196
    %v310 = vunpack.c.l.b16 %v197
    %v311 = vunpack.c.l.b16 %v198
    %v312 = vunpack.c.l.b16 %v199
    %v313 = vunpack.c.l.b16 %v200
    %v314 = vunpack.c.l.b16 %v201
    %v315 = vunpack.c.l.b16 %v202
    %v316 = vunpack.c.l.b16 %v203
    %v317 = vunpack.c.l.b16 %v204
    %v318 = vunpack.c.l.b16 %v205
    %v319 = vunpack.c.l.b16 %v206
    %v320 = vunpack.c.l.b16 %v207
    %v321 = vunpack.c.l.b16 %v208
    %v322 = vunpack.c.l.b16 %v209
    %v323 = vunpack.c.l.b16 %v210
    %v324 = vpack.c.b16 %v309, %v308
    %v325 = vpack.c.b16 %v311, %v310
    %v326 = vpack.c.b16 %v313, %v312
    %v327 = vpack.c.b16 %v315, %v314
    %v328 = vpack.c.b16 %v317, %v316
    %v329 = vpack.c.b16 %v319, %v318
    %v330 = vpack.c.b16 %v321, %v320
    %v331 = vpack.c.b16 %v323, %v322
    %340 = vmatpush.bf16.msra.mxu0 %v331
    %341 = vmatpush.bf16.msra.mxu0 %v330
    %342 = vmatpush.bf16.msra.mxu0 %v329
    %343 = vmatpush.bf16.msra.mxu0 %v328
    %344 = vmatpush.bf16.msra.mxu0 %v327
    %345 = vmatpush.bf16.msra.mxu0 %v326
    %346 = vmatpush.bf16.msra.mxu0 %v325
    %347 = vmatpush.bf16.msra.mxu0 %v324
    %348 = vmatmul.bf16.gmra.mxu0 %v194
    %v349 = vpop.f32.mrf.mxu0
    %v350 = vadd.f32 %v289, %v349
    %v351 = vpop.f32.mrf.mxu0
    %352 = vdwg.mxu0
    %v353 = vld [vmem:[#allocation7 + $0x2] sm:$0x1]
    %v355 = vperm.slane %v353, 0
    %v357 = vadd.f32 %v350, %v355
    %v358 = vmax.f32 %v357, 0.0
    %v359 = vpack.c.bf16 %v358, %v358
    %v360 = vld [vmem:[#allocation5 + $0x100] sm:$0xf]
    %v361 = vld [vmem:[#allocation5 + $0x108] sm:$0xf]
    %v362 = vld [vmem:[#allocation5 + $0x110] sm:$0xf]
    %v363 = vld [vmem:[#allocation5 + $0x118] sm:$0xf]
    %v364 = vld [vmem:[#allocation5 + $0x120] sm:$0xf]
    %v365 = vld [vmem:[#allocation5 + $0x128] sm:$0xf]
    %v366 = vld [vmem:[#allocation5 + $0x130] sm:$0xf]
    %v367 = vld [vmem:[#allocation5 + $0x138] sm:$0xf]
    %v368 = vld [vmem:[#allocation5 + $0x140] sm:$0xf]
    %v369 = vld [vmem:[#allocation5 + $0x148] sm:$0xf]
    %v370 = vld [vmem:[#allocation5 + $0x150] sm:$0xf]
    %v371 = vld [vmem:[#allocation5 + $0x158] sm:$0xf]
    %v372 = vld [vmem:[#allocation5 + $0x160] sm:$0xf]
    %v373 = vld [vmem:[#allocation5 + $0x168] sm:$0xf]
    %v374 = vld [vmem:[#allocation5 + $0x170] sm:$0xf]
    %v375 = vld [vmem:[#allocation5 + $0x178] sm:$0xf]
    %v376 = vld [vmem:[#allocation7 + $0x3] sm:$0x1]
    %v378 = vperm.slane %v376, 0
    %v396 = vunpack.c.l.b16 %v360
    %v397 = vunpack.c.l.b16 %v361
    %v398 = vunpack.c.l.b16 %v362
    %v399 = vunpack.c.l.b16 %v363
    %v400 = vunpack.c.l.b16 %v364
    %v401 = vunpack.c.l.b16 %v365
    %v402 = vunpack.c.l.b16 %v366
    %v403 = vunpack.c.l.b16 %v367
    %v404 = vunpack.c.l.b16 %v368
    %v405 = vunpack.c.l.b16 %v369
    %v406 = vunpack.c.l.b16 %v370
    %v407 = vunpack.c.l.b16 %v371
    %v408 = vunpack.c.l.b16 %v372
    %v409 = vunpack.c.l.b16 %v373
    %v410 = vunpack.c.l.b16 %v374
    %v411 = vunpack.c.l.b16 %v375
    %v412 = vpack.c.b16 %v397, %v396
    %v413 = vpack.c.b16 %v399, %v398
    %v414 = vpack.c.b16 %v401, %v400
    %v415 = vpack.c.b16 %v403, %v402
    %v416 = vpack.c.b16 %v405, %v404
    %v417 = vpack.c.b16 %v407, %v406
    %v418 = vpack.c.b16 %v409, %v408
    %v419 = vpack.c.b16 %v411, %v410
    %428 = vmatpush.bf16.msra.mxu0 %v419
    %429 = vmatpush.bf16.msra.mxu0 %v418
    %430 = vmatpush.bf16.msra.mxu0 %v417
    %431 = vmatpush.bf16.msra.mxu0 %v416
    %432 = vmatpush.bf16.msra.mxu0 %v415
    %433 = vmatpush.bf16.msra.mxu0 %v414
    %434 = vmatpush.bf16.msra.mxu0 %v413
    %435 = vmatpush.bf16.msra.mxu0 %v412
    %436 = vmatmul.bf16.gmra.mxu0 %v359
    %v437 = vpop.f32.mrf.mxu0
    %v438 = vadd.f32 %v378, %v437
    %v439 = vpop.f32.mrf.mxu0
    %440 = vdwg.mxu0
    %v441 = vmax.f32 %v438, 0.0
    %v442 = vpack.c.bf16 %v441, %v441
    %v443 = vld [vmem:[#allocation5 + $0x104] sm:$0xf]
    %v444 = vld [vmem:[#allocation5 + $0x10c] sm:$0xf]
    %v445 = vld [vmem:[#allocation5 + $0x114] sm:$0xf]
    %v446 = vld [vmem:[#allocation5 + $0x11c] sm:$0xf]
    %v447 = vld [vmem:[#allocation5 + $0x124] sm:$0xf]
    %v448 = vld [vmem:[#allocation5 + $0x12c] sm:$0xf]
    %v449 = vld [vmem:[#allocation5 + $0x134] sm:$0xf]
    %v450 = vld [vmem:[#allocation5 + $0x13c] sm:$0xf]
    %v451 = vld [vmem:[#allocation5 + $0x144] sm:$0xf]
    %v452 = vld [vmem:[#allocation5 + $0x14c] sm:$0xf]
    %v453 = vld [vmem:[#allocation5 + $0x154] sm:$0xf]
    %v454 = vld [vmem:[#allocation5 + $0x15c] sm:$0xf]
    %v455 = vld [vmem:[#allocation5 + $0x164] sm:$0xf]
    %v456 = vld [vmem:[#allocation5 + $0x16c] sm:$0xf]
    %v457 = vld [vmem:[#allocation5 + $0x174] sm:$0xf]
    %v458 = vld [vmem:[#allocation5 + $0x17c] sm:$0xf]
    %v459 = vld [vmem:[#allocation7 + $0x4] sm:$0x1]
    %v461 = vperm.slane %v459, 0
    %v479 = vunpack.c.l.b16 %v443
    %v480 = vunpack.c.l.b16 %v444
    %v481 = vunpack.c.l.b16 %v445
    %v482 = vunpack.c.l.b16 %v446
    %v483 = vunpack.c.l.b16 %v447
    %v484 = vunpack.c.l.b16 %v448
    %v485 = vunpack.c.l.b16 %v449
    %v486 = vunpack.c.l.b16 %v450
    %v487 = vunpack.c.l.b16 %v451
    %v488 = vunpack.c.l.b16 %v452
    %v489 = vunpack.c.l.b16 %v453
    %v490 = vunpack.c.l.b16 %v454
    %v491 = vunpack.c.l.b16 %v455
    %v492 = vunpack.c.l.b16 %v456
    %v493 = vunpack.c.l.b16 %v457
    %v494 = vunpack.c.l.b16 %v458
    %v495 = vpack.c.b16 %v480, %v479
    %v496 = vpack.c.b16 %v482, %v481
    %v497 = vpack.c.b16 %v484, %v483
    %v498 = vpack.c.b16 %v486, %v485
    %v499 = vpack.c.b16 %v488, %v487
    %v500 = vpack.c.b16 %v490, %v489
    %v501 = vpack.c.b16 %v492, %v491
    %v502 = vpack.c.b16 %v494, %v493
    %511 = vmatpush.bf16.msra.mxu0 %v502
    %512 = vmatpush.bf16.msra.mxu0 %v501
    %513 = vmatpush.bf16.msra.mxu0 %v500
    %514 = vmatpush.bf16.msra.mxu0 %v499
    %515 = vmatpush.bf16.msra.mxu0 %v498
    %516 = vmatpush.bf16.msra.mxu0 %v497
    %517 = vmatpush.bf16.msra.mxu0 %v496
    %518 = vmatpush.bf16.msra.mxu0 %v495
    %519 = vmatmul.bf16.gmra.mxu0 %v442
    %v520 = vpop.f32.mrf.mxu0
    %v521 = vadd.f32 %v461, %v520
    %v522 = vpop.f32.mrf.mxu0
    %523 = vdwg.mxu0
    %v524 = vpack.c.bf16 %v521, %v521
    %525 = vst [vmem:[%s3] sm:$0xf] %v524
    // Predicated region
    $region26: #{_fcnn_forward_impl.1} parent=1 // pred_check
      _
    $region27: #{_fcnn_forward_impl.1} parent=1 // pred_check_branch
      %527 = sbr.rel (0) target = $region29
    $region28: #{_fcnn_forward_impl.1} parent=1 // pred_region
      _
    $region29: #{_fcnn_forward_impl.1} parent=1 // pred_fallthru
      _
    // Predicated region
    $region30: #{_fcnn_forward_impl.1} parent=1 // pred_check
      _
    $region31: #{_fcnn_forward_impl.1} parent=1 // pred_check_branch
      %529 = sbr.rel (0) target = $region33
    $region32: #{_fcnn_forward_impl.1} parent=1 // pred_region
      _
    $region33: #{_fcnn_forward_impl.1} parent=1 // pred_fallthru
      _
    %530 = vsyncpa [#allocation4], 1
    %531 = vsyncpa [#allocation6], 1

</llo_original>
